<compile_context>
chip_gen: v7x
topology: tpu7x:2x2x1
jax: 0.10.0
libtpu: 0.0.40
codegen_flags: <defaults>
</compile_context>

<pallas_src>
import functools

import jax
import jax.numpy as jnp
from jax.experimental import pallas as pl
from jax.experimental.pallas import tpu as pltpu


def _round_up(x, m):
    return ((x + m - 1) // m) * m


def _ffn_kernel(x_ref, w1_ref, b1_ref, w2_ref, b2_ref, o_ref):
    # x_ref:  (TM, Dp)   w1_ref: (Dp, Hp)   b1_ref: (1, Hp)
    # w2_ref: (Hp, Dp)   b2_ref: (1, Dp)    o_ref:  (TM, Dp)

    # First linear: native-dtype operands on the MXU, f32 accumulation.
    h = jnp.dot(x_ref[...], w1_ref[...], preferred_element_type=jnp.float32)
    h = h + b1_ref[...]

    # leaky_relu (negative_slope = 0.01, matching F.leaky_relu default).
    h = jnp.maximum(h, 0.01 * h)

    # Second linear: cast the activation to the weight dtype (no-op for f32 weights,
    # bf16 MXU path for bf16 weights), accumulate in f32.
    y = jnp.dot(h.astype(w2_ref.dtype), w2_ref[...],
                preferred_element_type=jnp.float32)
    y = y + b2_ref[...]

    o_ref[...] = y.astype(o_ref.dtype)


@functools.partial(jax.jit, static_argnames=("tile_m",))
def position_wise_feed_forward(h, w1, b1, w2, b2, *, tile_m=256):
    """h: (..., input_dim).  w1: (input_dim, hidden), b1: (hidden,)
       w2: (hidden, input_dim), b2: (input_dim,).  Weights stored (in, out)."""
    orig_shape = h.shape
    D = orig_shape[-1]
    H = w1.shape[1]
    x = h.reshape(-1, D)
    M = x.shape[0]

    # Lane-dense padded feature dims (multiples of 128 for MXU + unmasked stores).
    Dp = _round_up(D, 128)
    Hp = _round_up(H, 128)

    # Row tile: multiple of 8 sublanes, never larger than the (8-padded) row count.
    tm = min(tile_m, _round_up(M, 8))
    Mp = _round_up(M, tm)

    def pad2(a, rows, cols):
        pr, pc = rows - a.shape[0], cols - a.shape[1]
        if pr or pc:
            a = jnp.pad(a, ((0, pr), (0, pc)))
        return a

    x_p = pad2(x, Mp, Dp)
    w1_p = pad2(w1, Dp, Hp)
    w2_p = pad2(w2, Hp, Dp)
    b1_p = pad2(b1.reshape(1, H), 1, Hp)
    b2_p = pad2(b2.reshape(1, D), 1, Dp)

    # Grid-invariant operands: single-buffered (no wasted second VMEM copy).
    resident = dict(pipeline_mode=pl.Buffered(1))

    out = pl.pallas_call(
        _ffn_kernel,
        out_shape=jax.ShapeDtypeStruct((Mp, Dp), h.dtype),
        grid_spec=pltpu.PrefetchScalarGridSpec(
            num_scalar_prefetch=0,
            grid=(Mp // tm,),
            in_specs=[
                pl.BlockSpec((tm, Dp), lambda i: (i, 0)),               # x: streamed
                pl.BlockSpec((Dp, Hp), lambda i: (0, 0), **resident),   # w1: resident
                pl.BlockSpec((1, Hp), lambda i: (0, 0), **resident),    # b1
                pl.BlockSpec((Hp, Dp), lambda i: (0, 0), **resident),   # w2: resident
                pl.BlockSpec((1, Dp), lambda i: (0, 0), **resident),    # b2
            ],
            out_specs=pl.BlockSpec((tm, Dp), lambda i: (i, 0)),
        ),
        compiler_params=pltpu.CompilerParams(
            dimension_semantics=("parallel",),
            vmem_limit_bytes=64 * 1024 * 1024,
        ),
    )(x_p, w1_p, b1_p, w2_p, b2_p)

    return out[:M, :D].reshape(orig_shape)


def reference_ffn(h, w1, b1, w2, b2):
    x = h.astype(jnp.float32)
    y = x @ w1.astype(jnp.float32) + b1.astype(jnp.float32)
    y = jnp.where(y > 0, y, 0.01 * y)
    y = y @ w2.astype(jnp.float32) + b2.astype(jnp.float32)
    return y.astype(h.dtype)


if __name__ == "__main__":
    # Small shapes consistent with the module: (batch, seq, input_dim)
    batch, seq, input_dim, hidden_dim = 2, 8, 32, 64

    key = jax.random.PRNGKey(0)
    k_h, k_w1, k_b1, k_w2, k_b2 = jax.random.split(key, 5)

    h = jax.random.normal(k_h, (batch, seq, input_dim), dtype=jnp.float32)

    # nn.Linear parameters, stored pre-transposed to (in, out) so the kernel does x @ W.
    w1 = jax.random.normal(k_w1, (input_dim, hidden_dim), dtype=jnp.float32) * 0.1
    b1 = jax.random.normal(k_b1, (hidden_dim,), dtype=jnp.float32) * 0.1
    w2 = jax.random.normal(k_w2, (hidden_dim, input_dim), dtype=jnp.float32) * 0.1
    b2 = jax.random.normal(k_b2, (input_dim,), dtype=jnp.float32) * 0.1

    out = position_wise_feed_forward(h, w1, b1, w2, b2)
    out = jax.block_until_ready(out)

    ref = reference_ffn(h, w1, b1, w2, b2)
    assert out.shape == h.shape
    assert jnp.allclose(out, ref, atol=1e-5, rtol=1e-5), float(jnp.max(jnp.abs(out - ref)))

    print("KERNEL_OK")
</pallas_src>

<mosaic_0001>
module attributes {stable_mosaic.version = 11 : i64} {
  func.func @_ffn_kernel(%arg0: i32, %arg1: memref<16x128xf32, #tpu.memory_space<vmem>>, %arg2: memref<128x128xf32, #tpu.memory_space<vmem>>, %arg3: memref<1x128xf32, #tpu.memory_space<vmem>>, %arg4: memref<128x128xf32, #tpu.memory_space<vmem>>, %arg5: memref<1x128xf32, #tpu.memory_space<vmem>>, %arg6: memref<16x128xf32, #tpu.memory_space<vmem>>) attributes {dimension_semantics = [#tpu.dimension_semantics<parallel>], iteration_bounds = array<i64: 1>, scalar_prefetch = 0 : i64, scratch_operands = 0 : i64, tpu.core_type = #tpu.core_type<tc>, window_params = [{transform_indices = @transform_0, window_bounds = array<i64: 16, 128>}, {pipeline_mode = #tpu.pipeline_mode<synchronous>, transform_indices = @transform_1, window_bounds = array<i64: 128, 128>}, {pipeline_mode = #tpu.pipeline_mode<synchronous>, transform_indices = @transform_2, window_bounds = array<i64: 1, 128>}, {pipeline_mode = #tpu.pipeline_mode<synchronous>, transform_indices = @transform_3, window_bounds = array<i64: 128, 128>}, {pipeline_mode = #tpu.pipeline_mode<synchronous>, transform_indices = @transform_4, window_bounds = array<i64: 1, 128>}, {transform_indices = @transform_5, window_bounds = array<i64: 16, 128>}]} {
    %c0 = arith.constant 0 : index
    %c0_0 = arith.constant 0 : index
    %0 = vector.load %arg1[%c0, %c0_0] : memref<16x128xf32, #tpu.memory_space<vmem>>, vector<16x128xf32>
    %c0_1 = arith.constant 0 : index
    %c0_2 = arith.constant 0 : index
    %1 = vector.load %arg2[%c0_1, %c0_2] : memref<128x128xf32, #tpu.memory_space<vmem>>, vector<128x128xf32>
    %cst = arith.constant dense<0.000000e+00> : vector<16x128xf32>
    %2 = tpu.matmul %0, %1, %cst {dimension_numbers = #tpu.dot_dimension_numbers<[1], [0], [0], [1], [0, 0, 1, 1], [], []>} : vector<16x128xf32>, vector<128x128xf32>, vector<16x128xf32> -> vector<16x128xf32>
    %c0_3 = arith.constant 0 : index
    %c0_4 = arith.constant 0 : index
    %3 = vector.load %arg3[%c0_3, %c0_4] : memref<1x128xf32, #tpu.memory_space<vmem>>, vector<1x128xf32>
    %4 = vector.broadcast %3 : vector<1x128xf32> to vector<16x128xf32>
    %5 = arith.addf %2, %4 : vector<16x128xf32>
    %cst_5 = arith.constant 0.00999999977 : f32
    %6 = vector.broadcast %cst_5 : f32 to vector<16x128xf32>
    %7 = arith.mulf %6, %5 : vector<16x128xf32>
    %8 = arith.maximumf %5, %7 : vector<16x128xf32>
    %c0_6 = arith.constant 0 : index
    %c0_7 = arith.constant 0 : index
    %9 = vector.load %arg4[%c0_6, %c0_7] : memref<128x128xf32, #tpu.memory_space<vmem>>, vector<128x128xf32>
    %cst_8 = arith.constant dense<0.000000e+00> : vector<16x128xf32>
    %10 = tpu.matmul %8, %9, %cst_8 {dimension_numbers = #tpu.dot_dimension_numbers<[1], [0], [0], [1], [0, 0, 1, 1], [], []>} : vector<16x128xf32>, vector<128x128xf32>, vector<16x128xf32> -> vector<16x128xf32>
    %c0_9 = arith.constant 0 : index
    %c0_10 = arith.constant 0 : index
    %11 = vector.load %arg5[%c0_9, %c0_10] : memref<1x128xf32, #tpu.memory_space<vmem>>, vector<1x128xf32>
    %12 = vector.broadcast %11 : vector<1x128xf32> to vector<16x128xf32>
    %13 = arith.addf %10, %12 : vector<16x128xf32>
    %c0_11 = arith.constant 0 : index
    %c0_12 = arith.constant 0 : index
    %14 = vector.load %arg6[%c0_11, %c0_12] : memref<16x128xf32, #tpu.memory_space<vmem>>, vector<16x128xf32>
    tpu.vector_store %arg6[%c0_11, %c0_12], %13 {strides = array<i32>} : memref<16x128xf32, #tpu.memory_space<vmem>>, vector<16x128xf32>,
    return
  }
  func.func @transform_0(%arg0: i32) -> (i32, i32) {
    %c0_i32 = arith.constant 0 : i32
    %c0_i32_0 = arith.constant 0 : i32
    return %arg0, %c0_i32 : i32, i32
  }
  func.func @transform_1(%arg0: i32) -> (i32, i32) {
    %c0_i32 = arith.constant 0 : i32
    %c0_i32_0 = arith.constant 0 : i32
    %c0_i32_1 = arith.constant 0 : i32
    return %c0_i32, %c0_i32_0 : i32, i32
  }
  func.func @transform_2(%arg0: i32) -> (i32, i32) {
    %c0_i32 = arith.constant 0 : i32
    %c0_i32_0 = arith.constant 0 : i32
    %c0_i32_1 = arith.constant 0 : i32
    return %c0_i32, %c0_i32_0 : i32, i32
  }
  func.func @transform_3(%arg0: i32) -> (i32, i32) {
    %c0_i32 = arith.constant 0 : i32
    %c0_i32_0 = arith.constant 0 : i32
    %c0_i32_1 = arith.constant 0 : i32
    return %c0_i32, %c0_i32_0 : i32, i32
  }
  func.func @transform_4(%arg0: i32) -> (i32, i32) {
    %c0_i32 = arith.constant 0 : i32
    %c0_i32_0 = arith.constant 0 : i32
    %c0_i32_1 = arith.constant 0 : i32
    return %c0_i32, %c0_i32_0 : i32, i32
  }
  func.func @transform_5(%arg0: i32) -> (i32, i32) {
    %c0_i32 = arith.constant 0 : i32
    %c0_i32_0 = arith.constant 0 : i32
    return %arg0, %c0_i32 : i32, i32
  }
}

</mosaic_0001>

<llo_original>
// kernel: position_wise_feed_forward.1
$region0: #{position_wise_feed_forward.1}
  #allocation0 [shape = 'u32[]', space=smem, size = 0x4, offset = 0x4, fixed_abs, tag = 'smem constant byte address 0x4 - core index']
  #allocation1 [shape = 'u32[144,128]{1,0:T(1,128)}', space=vmem, size = 0x12000, scoped, tag = 'internal scratch']
  %s0 = inlined_call_operand.hbm [shape: f32[16,128], index: 0, kind: input, shape index: {}]
  %s1 = inlined_call_operand.hbm [shape: f32[128,128], index: 1, kind: input, shape index: {}]
  %s2 = inlined_call_operand.hbm [shape: f32[1,128], index: 2, kind: input, shape index: {}]
  %s3 = inlined_call_operand.hbm [shape: f32[128,128], index: 3, kind: input, shape index: {}]
  %s4 = inlined_call_operand.hbm [shape: f32[1,128], index: 4, kind: input, shape index: {}]
  %s5 = inlined_call_operand.hbm [shape: f32[16,128], index: 5, kind: output, shape index: {}]
  %s6 = sld [smem:[#allocation0]]
  $region50: #{position_wise_feed_forward.1} parent=0
    _
  %s8 = ssub.s32 1, %s6
  %s9 = scalar_select 0, %s8, %s6
  $region1: #{position_wise_feed_forward.1} parent=0
    #allocation2 [shape = 'u8[8192]{0}', space=vmem, size = 0x2000, scoped, tag = 'input window, operand 0, single buffered']
    #allocation3 [shape = 's32[1]{0}', space=sflag, size = 0x4, scoped, tag = 'scoped memory for position_wise_feed_forward.1']
    #allocation4 [shape = 's32[1]{0}', space=sflag, size = 0x4, scoped, tag = 'scoped memory for position_wise_feed_forward.1']
    #allocation5 [shape = 'u8[65536]{0}', space=vmem, size = 0x10000, scoped, tag = 'input window, operand 1, single buffered']
    #allocation6 [shape = 's32[1]{0}', space=sflag, size = 0x4, scoped, tag = 'scoped memory for position_wise_feed_forward.1']
    #allocation7 [shape = 'u8[512]{0}', space=vmem, size = 0x400, scoped, tag = 'input window, operand 2, single buffered']
    #allocation8 [shape = 'u8[65536]{0}', space=vmem, size = 0x10000, scoped, tag = 'input window, operand 3, single buffered']
    #allocation9 [shape = 's32[1]{0}', space=sflag, size = 0x4, scoped, tag = 'scoped memory for position_wise_feed_forward.1']
    #allocation10 [shape = 'u8[512]{0}', space=vmem, size = 0x400, scoped, tag = 'input window, operand 4, single buffered']
    #allocation11 [shape = 'u8[8192]{0}', space=vmem, size = 0x2000, scoped, tag = 'output window, operand 0, single buffered']
    %10 = vsyncpa [#allocation3], 0
    %11 = vsyncpa [#allocation6], 0
    %12 = vsyncpa [#allocation9], 0
    %13 = vsyncpa [#allocation4], 0
    // Predicated region
    $region2: #{position_wise_feed_forward.1} parent=1 // pred_check
      _
    $region3: #{position_wise_feed_forward.1} parent=1 // pred_check_branch
      %15 = sbr.rel (0) target = $region5
    $region4: #{position_wise_feed_forward.1} parent=1 // pred_region
      %s17 = ssub.s32 256, 256
      %18 = vsyncadd [#allocation3], %s17
      %s19 = sshll.u32 [#allocation2], 4
      %s20 = int_to_ptr.vmem [resolvable:$true] %s19
      %25 = dma.hbm_to_vmem [thread:$0]  %s0, 256, %s20, [#allocation3], 128, 128, 8
    $region5: #{position_wise_feed_forward.1} parent=1 // pred_fallthru
      _
    // Predicated region
    $region6: #{position_wise_feed_forward.1} parent=1 // pred_check
      _
    $region7: #{position_wise_feed_forward.1} parent=1 // pred_check_branch
      %27 = sbr.rel (0) target = $region9
    $region8: #{position_wise_feed_forward.1} parent=1 // pred_region
      %s29 = ssub.s32 2048, 2048
      %30 = vsyncadd [#allocation6], %s29
      %s31 = sshll.u32 [#allocation5], 4
      %s32 = int_to_ptr.vmem [resolvable:$true] %s31
      %37 = dma.hbm_to_vmem [thread:$0]  %s1, 2048, %s32, [#allocation6], 128, 128, 8
    $region9: #{position_wise_feed_forward.1} parent=1 // pred_fallthru
      _
    // Predicated region
    $region10: #{position_wise_feed_forward.1} parent=1 // pred_check
      _
    $region11: #{position_wise_feed_forward.1} parent=1 // pred_check_branch
      %39 = sbr.rel (0) target = $region13
    $region12: #{position_wise_feed_forward.1} parent=1 // pred_region
      %s41 = ssub.s32 16, 16
      %42 = vsyncadd [#allocation6], %s41
      %s44 = sshll.u32 [#allocation7], 4
      %s45 = int_to_ptr.vmem [resolvable:$true] %s44
      %47 = dma.hbm_to_vmem [thread:$0]  %s2, 16, %s45, [#allocation6]
    $region13: #{position_wise_feed_forward.1} parent=1 // pred_fallthru
      _
    // Predicated region
    $region14: #{position_wise_feed_forward.1} parent=1 // pred_check
      _
    $region15: #{position_wise_feed_forward.1} parent=1 // pred_check_branch
      %49 = sbr.rel (0) target = $region17
    $region16: #{position_wise_feed_forward.1} parent=1 // pred_region
      %s51 = ssub.s32 2048, 2048
      %52 = vsyncadd [#allocation9], %s51
      %s53 = sshll.u32 [#allocation8], 4
      %s54 = int_to_ptr.vmem [resolvable:$true] %s53
      %59 = dma.hbm_to_vmem [thread:$0]  %s3, 2048, %s54, [#allocation9], 128, 128, 8
    $region17: #{position_wise_feed_forward.1} parent=1 // pred_fallthru
      _
    // Predicated region
    $region18: #{position_wise_feed_forward.1} parent=1 // pred_check
      _
    $region19: #{position_wise_feed_forward.1} parent=1 // pred_check_branch
      %61 = sbr.rel (0) target = $region21
    $region20: #{position_wise_feed_forward.1} parent=1 // pred_region
      %s63 = ssub.s32 16, 16
      %64 = vsyncadd [#allocation9], %s63
      %s66 = sshll.u32 [#allocation10], 4
      %s67 = int_to_ptr.vmem [resolvable:$true] %s66
      %69 = dma.hbm_to_vmem [thread:$0]  %s4, 16, %s67, [#allocation9]
    $region21: #{position_wise_feed_forward.1} parent=1 // pred_fallthru
      _
    // Predicated region
    $region22: #{position_wise_feed_forward.1} parent=1 // pred_check
      _
    $region23: #{position_wise_feed_forward.1} parent=1 // pred_check_branch
      %71 = sbr.rel (0) target = $region25
    $region24: #{position_wise_feed_forward.1} parent=1 // pred_region
      %72 = dma.done [#allocation3], 256
    $region25: #{position_wise_feed_forward.1} parent=1 // pred_fallthru
      _
    // Predicated region
    $region26: #{position_wise_feed_forward.1} parent=1 // pred_check
      _
    $region27: #{position_wise_feed_forward.1} parent=1 // pred_check_branch
      %74 = sbr.rel (0) target = $region29
    $region28: #{position_wise_feed_forward.1} parent=1 // pred_region
      %75 = dma.done [#allocation6], 2048
    $region29: #{position_wise_feed_forward.1} parent=1 // pred_fallthru
      _
    // Predicated region
    $region30: #{position_wise_feed_forward.1} parent=1 // pred_check
      _
    $region31: #{position_wise_feed_forward.1} parent=1 // pred_check_branch
      %77 = sbr.rel (0) target = $region33
    $region32: #{position_wise_feed_forward.1} parent=1 // pred_region
      %78 = dma.done [#allocation6], 16
    $region33: #{position_wise_feed_forward.1} parent=1 // pred_fallthru
      _
    // Predicated region
    $region34: #{position_wise_feed_forward.1} parent=1 // pred_check
      _
    $region35: #{position_wise_feed_forward.1} parent=1 // pred_check_branch
      %80 = sbr.rel (0) target = $region37
    $region36: #{position_wise_feed_forward.1} parent=1 // pred_region
      %81 = dma.done [#allocation9], 2048
    $region37: #{position_wise_feed_forward.1} parent=1 // pred_fallthru
      _
    // Predicated region
    $region38: #{position_wise_feed_forward.1} parent=1 // pred_check
      _
    $region39: #{position_wise_feed_forward.1} parent=1 // pred_check_branch
      %83 = sbr.rel (0) target = $region41
    $region40: #{position_wise_feed_forward.1} parent=1 // pred_region
      %84 = dma.done [#allocation9], 16
    $region41: #{position_wise_feed_forward.1} parent=1 // pred_fallthru
      _
    %v85 = vld [vmem:[#allocation2] sm:$0xff]
    %v86 = vld [vmem:[#allocation2 + $0x8] sm:$0xff]
    %v87 = vld [vmem:[#allocation5] sm:$0xff]
    %v88 = vld [vmem:[#allocation5 + $0x8] sm:$0xff]
    %v89 = vld [vmem:[#allocation5 + $0x10] sm:$0xff]
    %v90 = vld [vmem:[#allocation5 + $0x18] sm:$0xff]
    %v91 = vld [vmem:[#allocation5 + $0x20] sm:$0xff]
    %v92 = vld [vmem:[#allocation5 + $0x28] sm:$0xff]
    %v93 = vld [vmem:[#allocation5 + $0x30] sm:$0xff]
    %v94 = vld [vmem:[#allocation5 + $0x38] sm:$0xff]
    %v95 = vld [vmem:[#allocation5 + $0x40] sm:$0xff]
    %v96 = vld [vmem:[#allocation5 + $0x48] sm:$0xff]
    %v97 = vld [vmem:[#allocation5 + $0x50] sm:$0xff]
    %v98 = vld [vmem:[#allocation5 + $0x58] sm:$0xff]
    %v99 = vld [vmem:[#allocation5 + $0x60] sm:$0xff]
    %v100 = vld [vmem:[#allocation5 + $0x68] sm:$0xff]
    %v101 = vld [vmem:[#allocation5 + $0x70] sm:$0xff]
    %v102 = vld [vmem:[#allocation5 + $0x78] sm:$0xff]
    %v103 = vld [vmem:[#allocation7] sm:$0x1]
    %v105 = vlaneseq
    %v106 = vshrl.u32 %v105, 7
    %v107 = vsub.s32 0, %v106
    %v108 = vrot.slane %v103, %v107
    %110 = vmatprep.subr.mxu0 0.0
    %111 = vmatpush1.msra.mxu0 %v87
    %112 = vmatprep.subr.mxu0 0.0
    %113 = vmatpush1.msra.mxu0 %v88
    %114 = vmatprep.subr.mxu0 0.0
    %115 = vmatpush1.msra.mxu0 %v89
    %116 = vmatprep.subr.mxu0 0.0
    %117 = vmatpush1.msra.mxu0 %v90
    %118 = vmatprep.subr.mxu0 0.0
    %119 = vmatpush1.msra.mxu0 %v91
    %120 = vmatprep.subr.mxu0 0.0
    %121 = vmatpush1.msra.mxu0 %v92
    %122 = vmatprep.subr.mxu0 0.0
    %123 = vmatpush1.msra.mxu0 %v93
    %124 = vmatprep.subr.mxu0 0.0
    %125 = vmatpush1.msra.mxu0 %v94
    %126 = vmatprep.subr.mxu0 0.0
    %127 = vmatpush1.msra.mxu0 %v95
    %128 = vmatprep.subr.mxu0 0.0
    %129 = vmatpush1.msra.mxu0 %v96
    %130 = vmatprep.subr.mxu0 0.0
    %131 = vmatpush1.msra.mxu0 %v97
    %132 = vmatprep.subr.mxu0 0.0
    %133 = vmatpush1.msra.mxu0 %v98
    %134 = vmatprep.subr.mxu0 0.0
    %135 = vmatpush1.msra.mxu0 %v99
    %136 = vmatprep.subr.mxu0 0.0
    %137 = vmatpush1.msra.mxu0 %v100
    %138 = vmatprep.subr.mxu0 0.0
    %139 = vmatpush1.msra.mxu0 %v101
    %140 = vmatprep.subr.mxu0 0.0
    %141 = vmatpush1.msra.mxu0 %v102
    %142 = vmatprep.subr.mxu0 0.0
    %143 = vmatpush1.msra.mxu0 0.0
    %144 = vmatprep.subr.mxu0 0.0
    %145 = vmatpush1.msra.mxu0 0.0
    %146 = vmatprep.subr.mxu0 0.0
    %147 = vmatpush1.msra.mxu0 0.0
    %148 = vmatprep.subr.mxu0 0.0
    %149 = vmatpush1.msra.mxu0 0.0
    %150 = vmatprep.subr.mxu0 0.0
    %151 = vmatpush1.msra.mxu0 0.0
    %152 = vmatprep.subr.mxu0 0.0
    %153 = vmatpush1.msra.mxu0 0.0
    %154 = vmatprep.subr.mxu0 0.0
    %155 = vmatpush1.msra.mxu0 0.0
    %156 = vmatprep.subr.mxu0 0.0
    %157 = vmatpush1.msra.mxu0 0.0
    %158 = vmatprep.subr.mxu0 0.0
    %159 = vmatpush1.msra.mxu0 0.0
    %160 = vmatprep.subr.mxu0 0.0
    %161 = vmatpush1.msra.mxu0 0.0
    %162 = vmatprep.subr.mxu0 0.0
    %163 = vmatpush1.msra.mxu0 0.0
    %164 = vmatprep.subr.mxu0 0.0
    %165 = vmatpush1.msra.mxu0 0.0
    %166 = vmatprep.subr.mxu0 0.0
    %167 = vmatpush1.msra.mxu0 0.0
    %168 = vmatprep.subr.mxu0 0.0
    %169 = vmatpush1.msra.mxu0 0.0
    %170 = vmatprep.subr.mxu0 0.0
    %171 = vmatpush1.msra.mxu0 0.0
    %172 = vmatprep.subr.mxu0 0.0
    %173 = vmatpush1.msra.mxu0 0.0
    %174 = vmatprep.mubr.f32.mxu0 0.0
    %175 = vmatmul.mubr.f32.gmra.mrb[0].mxu0 %v85
    %v176 = vpop.f32.mrb[0].mxu0
    %v177 = vadd.f32 %v108, %v176
    %v178 = vpop.f32.mrb[0].mxu0
    %179 = vmatprep.mubr.f32.mxu0 0.0
    %180 = vmatmul.mubr.f32.gmra.mrb[0].mxu0 %v86
    %v181 = vpop.f32.mrb[0].mxu0
    %v182 = vadd.f32 %v108, %v181
    %v183 = vpop.f32.mrb[0].mxu0
    %184 = vdwg.mxu0
    %v185 = vmul.f32 %v177, 0.01
    %v186 = vmul.f32 %v182, 0.01
    %v187 = vmax.f32 %v177, %v185
    %v188 = vmax.f32 %v182, %v186
    %v189 = vld [vmem:[#allocation8] sm:$0xff]
    %v190 = vld [vmem:[#allocation8 + $0x8] sm:$0xff]
    %v191 = vld [vmem:[#allocation8 + $0x10] sm:$0xff]
    %v192 = vld [vmem:[#allocation8 + $0x18] sm:$0xff]
    %v193 = vld [vmem:[#allocation8 + $0x20] sm:$0xff]
    %v194 = vld [vmem:[#allocation8 + $0x28] sm:$0xff]
    %v195 = vld [vmem:[#allocation8 + $0x30] sm:$0xff]
    %v196 = vld [vmem:[#allocation8 + $0x38] sm:$0xff]
    %v197 = vld [vmem:[#allocation8 + $0x40] sm:$0xff]
    %v198 = vld [vmem:[#allocation8 + $0x48] sm:$0xff]
    %v199 = vld [vmem:[#allocation8 + $0x50] sm:$0xff]
    %v200 = vld [vmem:[#allocation8 + $0x58] sm:$0xff]
    %v201 = vld [vmem:[#allocation8 + $0x60] sm:$0xff]
    %v202 = vld [vmem:[#allocation8 + $0x68] sm:$0xff]
    %v203 = vld [vmem:[#allocation8 + $0x70] sm:$0xff]
    %v204 = vld [vmem:[#allocation8 + $0x78] sm:$0xff]
    %v205 = vld [vmem:[#allocation10] sm:$0x1]
    %v207 = vlaneseq
    %v208 = vshrl.u32 %v207, 7
    %v209 = vsub.s32 0, %v208
    %v210 = vrot.slane %v205, %v209
    %212 = vmatprep.subr.mxu0 0.0
    %213 = vmatpush1.msra.mxu0 %v189
    %214 = vmatprep.subr.mxu0 0.0
    %215 = vmatpush1.msra.mxu0 %v190
    %216 = vmatprep.subr.mxu0 0.0
    %217 = vmatpush1.msra.mxu0 %v191
    %218 = vmatprep.subr.mxu0 0.0
    %219 = vmatpush1.msra.mxu0 %v192
    %220 = vmatprep.subr.mxu0 0.0
    %221 = vmatpush1.msra.mxu0 %v193
    %222 = vmatprep.subr.mxu0 0.0
    %223 = vmatpush1.msra.mxu0 %v194
    %224 = vmatprep.subr.mxu0 0.0
    %225 = vmatpush1.msra.mxu0 %v195
    %226 = vmatprep.subr.mxu0 0.0
    %227 = vmatpush1.msra.mxu0 %v196
    %228 = vmatprep.subr.mxu0 0.0
    %229 = vmatpush1.msra.mxu0 %v197
    %230 = vmatprep.subr.mxu0 0.0
    %231 = vmatpush1.msra.mxu0 %v198
    %232 = vmatprep.subr.mxu0 0.0
    %233 = vmatpush1.msra.mxu0 %v199
    %234 = vmatprep.subr.mxu0 0.0
    %235 = vmatpush1.msra.mxu0 %v200
    %236 = vmatprep.subr.mxu0 0.0
    %237 = vmatpush1.msra.mxu0 %v201
    %238 = vmatprep.subr.mxu0 0.0
    %239 = vmatpush1.msra.mxu0 %v202
    %240 = vmatprep.subr.mxu0 0.0
    %241 = vmatpush1.msra.mxu0 %v203
    %242 = vmatprep.subr.mxu0 0.0
    %243 = vmatpush1.msra.mxu0 %v204
    %244 = vmatprep.subr.mxu0 0.0
    %245 = vmatpush1.msra.mxu0 0.0
    %246 = vmatprep.subr.mxu0 0.0
    %247 = vmatpush1.msra.mxu0 0.0
    %248 = vmatprep.subr.mxu0 0.0
    %249 = vmatpush1.msra.mxu0 0.0
    %250 = vmatprep.subr.mxu0 0.0
    %251 = vmatpush1.msra.mxu0 0.0
    %252 = vmatprep.subr.mxu0 0.0
    %253 = vmatpush1.msra.mxu0 0.0
    %254 = vmatprep.subr.mxu0 0.0
    %255 = vmatpush1.msra.mxu0 0.0
    %256 = vmatprep.subr.mxu0 0.0
    %257 = vmatpush1.msra.mxu0 0.0
    %258 = vmatprep.subr.mxu0 0.0
    %259 = vmatpush1.msra.mxu0 0.0
    %260 = vmatprep.subr.mxu0 0.0
    %261 = vmatpush1.msra.mxu0 0.0
    %262 = vmatprep.subr.mxu0 0.0
    %263 = vmatpush1.msra.mxu0 0.0
    %264 = vmatprep.subr.mxu0 0.0
    %265 = vmatpush1.msra.mxu0 0.0
    %266 = vmatprep.subr.mxu0 0.0
    %267 = vmatpush1.msra.mxu0 0.0
    %268 = vmatprep.subr.mxu0 0.0
    %269 = vmatpush1.msra.mxu0 0.0
    %270 = vmatprep.subr.mxu0 0.0
    %271 = vmatpush1.msra.mxu0 0.0
    %272 = vmatprep.subr.mxu0 0.0
    %273 = vmatpush1.msra.mxu0 0.0
    %274 = vmatprep.subr.mxu0 0.0
    %275 = vmatpush1.msra.mxu0 0.0
    %276 = vmatprep.mubr.f32.mxu0 0.0
    %277 = vmatmul.mubr.f32.gmra.mrb[0].mxu0 %v187
    %v278 = vpop.f32.mrb[0].mxu0
    %v279 = vadd.f32 %v210, %v278
    %v280 = vpop.f32.mrb[0].mxu0
    %281 = vmatprep.mubr.f32.mxu0 0.0
    %282 = vmatmul.mubr.f32.gmra.mrb[0].mxu0 %v188
    %v283 = vpop.f32.mrb[0].mxu0
    %v284 = vadd.f32 %v210, %v283
    %v285 = vpop.f32.mrb[0].mxu0
    %286 = vdwg.mxu0
    %287 = vst [vmem:[#allocation11] sm:$0xff] %v279
    %288 = vst [vmem:[#allocation11 + $0x8] sm:$0xff] %v284
    // Predicated region
    $region42: #{position_wise_feed_forward.1} parent=1 // pred_check
      _
    $region43: #{position_wise_feed_forward.1} parent=1 // pred_check_branch
      %290 = sbr.rel (0) target = $region45
    $region44: #{position_wise_feed_forward.1} parent=1 // pred_region
      %s292 = ssub.s32 256, 256
      %293 = vsyncadd [#allocation4], %s292
      %s294 = sshll.u32 [#allocation11], 4
      %s295 = int_to_ptr.vmem [resolvable:$true] %s294
      %300 = dma.vmem_to_hbm [thread:$0]  %s295, 256, %s5, [#allocation4], 128, 128, 8
    $region45: #{position_wise_feed_forward.1} parent=1 // pred_fallthru
      _
    // Predicated region
    $region46: #{position_wise_feed_forward.1} parent=1 // pred_check
      _
    $region47: #{position_wise_feed_forward.1} parent=1 // pred_check_branch
      %302 = sbr.rel (0) target = $region49
    $region48: #{position_wise_feed_forward.1} parent=1 // pred_region
      %303 = dma.done [#allocation4], 256
    $region49: #{position_wise_feed_forward.1} parent=1 // pred_fallthru
      _
    %304 = vsyncpa [#allocation3], 1
    %305 = vsyncpa [#allocation6], 1
    %306 = vsyncpa [#allocation9], 1
    %307 = vsyncpa [#allocation4], 1

</llo_original>
